<compile_context>
chip_gen: v7x
topology: tpu7x:2x2x1
jax: 0.10.0
libtpu: 0.0.40
codegen_flags: <defaults>
</compile_context>

<pallas_src>
import jax
import jax.numpy as jnp
from jax.experimental import pallas as pl
from jax.experimental.pallas import tpu as pltpu


def _tpu_defaults():
    """Returns (num_tensorcores_to_split_over, target f32 elems per block)."""
    cores, target_elems = 1, 512 * 1024          # ~2 MiB f32 blocks (v5e/v6e)
    try:
        kind = jax.devices()[0].device_kind.lower()
    except Exception:
        kind = ""
    if "7" in kind:                               # v7x: 2 TCs, ~3.2 TB/s/TC
        cores, target_elems = 2, 1024 * 1024      # ~4 MiB f32 blocks
    return cores, target_elems


def _make_mse_partial_kernel(R, Wl, block_rows, acc_rows, steps_per_core,
                             tail_exists):
    """Kernel computing per-core partial sums of mask*res^2 and mask."""
    use_fold = (acc_rows == 8 and block_rows > 8)

    def fold(x):
        # Pure element-wise (VALU) fold of a block into the small accumulator.
        if use_fold:
            return x.reshape(block_rows // 8, 8, Wl).sum(axis=0)
        return x

    def kernel(pred_ref, tgt_ref, mask_ref, loss_out_ref, msum_out_ref,
               loss_acc, mask_acc):
        c = pl.program_id(0)          # core axis (parallel)
        i = pl.program_id(1)          # reduction axis

        @pl.when(i == 0)
        def _init():
            loss_acc[...] = jnp.zeros_like(loss_acc)
            mask_acc[...] = jnp.zeros_like(mask_acc)

        pred = pred_ref[...].astype(jnp.float32)
        tgt = tgt_ref[...].astype(jnp.float32)
        m = mask_ref[...].astype(jnp.float32)
        res = pred - tgt
        w = m * res * res

        def accumulate(w_blk, m_blk):
            loss_acc[...] += fold(w_blk)
            mask_acc[...] += fold(m_blk)

        if tail_exists:
            # Logical (unclamped) first row of this step; >= R for OOB steps.
            row0 = (c * steps_per_core + i) * block_rows

            @pl.when(row0 + block_rows <= R)
            def _interior():                      # fast path: no masking cost
                accumulate(w, m)

            @pl.when(row0 + block_rows > R)
            def _tail():                          # only the ragged/OOB steps
                ridx = jax.lax.broadcasted_iota(jnp.int32, (block_rows, Wl), 0)
                valid = (row0 + ridx) < R
                accumulate(jnp.where(valid, w, 0.0), jnp.where(valid, m, 0.0))
        else:
            accumulate(w, m)

        # Single small write-out per core on its final step (out index_map is
        # constant over the reduction axis, so this is the value written back).
        @pl.when(i == pl.num_programs(1) - 1)
        def _finalize():
            loss_out_ref[0] = loss_acc[...]
            msum_out_ref[0] = mask_acc[...]

    return kernel


def mse_loss_pallas(prediction, target, mask, target_block_elems=None):
    """Masked MSE loss, batch-based reduction.  Inputs: [B, H, W]."""
    assert prediction.ndim == 3
    B, H, W = prediction.shape
    assert target.shape == (B, H, W) and mask.shape == (B, H, W)

    cores_hint, default_target = _tpu_defaults()
    if target_block_elems is None:
        target_block_elems = default_target

    # Keep bool masks narrow (1 B/elem of HBM traffic); upcast to f32 in VMEM.
    if mask.dtype == jnp.bool_:
        mask = mask.astype(jnp.int8)

    # Lane-dense flatten (free reshape of contiguous arrays) when possible so
    # all 128 lanes are used; fall back to (B*H, W) otherwise.
    N = B * H * W
    if N % 128 == 0:
        R, Wl = N // 128, 128
    else:
        R, Wl = B * H, W
    pred2 = prediction.reshape(R, Wl)
    tgt2 = target.reshape(R, Wl)
    mask2 = mask.reshape(R, Wl)

    # Row-block: ~target_block_elems elements per block, multiple of 8
    # sublanes, or the full extent when the problem is small.
    ideal = max(8, (target_block_elems // max(Wl, 1)) // 8 * 8)
    block_rows = R if ideal >= R else ideal

    total_blocks = pl.cdiv(R, block_rows)
    cores = min(cores_hint, total_blocks)
    steps_per_core = pl.cdiv(total_blocks, cores)
    clamp = cores * steps_per_core != total_blocks   # grid has OOB steps
    tail_exists = clamp or (total_blocks * block_rows != R)

    # Small (8, Wl) accumulators on clean lane-dense shapes; block-shaped
    # otherwise (only hit for small / non-128-divisible problems).
    acc_rows = 8 if (block_rows % 8 == 0 and Wl % 128 == 0) else block_rows

    def in_index_map(c, i):
        b = c * steps_per_core + i
        if clamp:
            # Keep the DMA in bounds; the kernel zeroes these steps.
            b = jnp.minimum(b, total_blocks - 1)
        return (b, 0)

    in_spec = pl.BlockSpec((block_rows, Wl), in_index_map)
    out_spec = pl.BlockSpec((1, acc_rows, Wl), lambda c, i: (c, 0, 0))

    cost = pl.CostEstimate(
        flops=5 * N,
        transcendentals=0,
        bytes_accessed=int(pred2.nbytes + tgt2.nbytes + mask2.nbytes)
        + 2 * cores * acc_rows * Wl * 4,
    )

    def build(dimension_semantics):
        return pl.pallas_call(
            _make_mse_partial_kernel(R, Wl, block_rows, acc_rows,
                                     steps_per_core, tail_exists),
            out_shape=(
                jax.ShapeDtypeStruct((cores, acc_rows, Wl), jnp.float32),
                jax.ShapeDtypeStruct((cores, acc_rows, Wl), jnp.float32),
            ),
            grid_spec=pltpu.PrefetchScalarGridSpec(
                num_scalar_prefetch=0,
                grid=(cores, steps_per_core),
                in_specs=[in_spec, in_spec, in_spec],
                out_specs=[out_spec, out_spec],
                scratch_shapes=[
                    pltpu.VMEM((acc_rows, Wl), jnp.float32),  # sum(mask*res^2)
                    pltpu.VMEM((acc_rows, Wl), jnp.float32),  # sum(mask)
                ],
            ),
            compiler_params=pltpu.CompilerParams(
                dimension_semantics=dimension_semantics,
                vmem_limit_bytes=40 * 1024 * 1024,
            ),
            cost_estimate=cost,
        )

    if cores > 1:
        # v7x: actually shard the leading axis across the two TensorCores.
        try:
            loss_parts, mask_parts = build(
                (pltpu.CORE_PARALLEL, pltpu.ARBITRARY))(pred2, tgt2, mask2)
        except Exception:
            loss_parts, mask_parts = build(
                ("parallel", "arbitrary"))(pred2, tgt2, mask2)
    else:
        loss_parts, mask_parts = build(
            ("parallel", "arbitrary"))(pred2, tgt2, mask2)

    # Tiny wrapper-side reduction over the per-core partial blocks + guarded
    # divide (batch-based reduction of the reference).
    loss_sum = jnp.sum(loss_parts)
    mask_sum = jnp.sum(mask_parts)
    divisor = 2.0 * mask_sum
    return jnp.where(divisor == 0.0, jnp.float32(0.0), loss_sum / divisor)


# TODO(synk): the 'image-based' reduction variant (per-image normalization +
# mean) is not implemented; the module default ('batch-based') is implemented.


def _mse_loss_ref(prediction, target, mask):
    mask = mask.astype(jnp.float32)
    prediction = prediction.astype(jnp.float32)
    target = target.astype(jnp.float32)
    M = jnp.sum(mask, axis=(1, 2))
    res = prediction - target
    image_loss = jnp.sum(mask * res * res, axis=(1, 2))
    divisor = jnp.sum(2.0 * M)
    return jnp.where(divisor == 0.0, 0.0, jnp.sum(image_loss) / divisor)


if __name__ == "__main__":
    key = jax.random.PRNGKey(0)
    k1, k2, k3, k4 = jax.random.split(key, 4)

    # 1) Small smoke test at the module's typical [B, H, W] layout
    #    (lane-dense flatten path, single block).
    B, H, W = 2, 16, 16
    prediction = jax.random.normal(k1, (B, H, W), dtype=jnp.float32)
    target = jax.random.normal(k2, (B, H, W), dtype=jnp.float32)
    mask_f = (jax.random.uniform(k3, (B, H, W)) > 0.3).astype(jnp.float32)

    loss = mse_loss_pallas(prediction, target, mask_f)
    jax.block_until_ready(loss)
    ref = _mse_loss_ref(prediction, target, mask_f)
    assert jnp.allclose(loss, ref, rtol=1e-5, atol=1e-6), (loss, ref)

    # 2) Same inputs with a bool mask (narrow int8 HBM path).
    mask_b = mask_f > 0.5
    loss_b = mse_loss_pallas(prediction, target, mask_b)
    jax.block_until_ready(loss_b)
    ref_b = _mse_loss_ref(prediction, target, mask_b.astype(jnp.float32))
    assert jnp.allclose(loss_b, ref_b, rtol=1e-5, atol=1e-6), (loss_b, ref_b)

    # 3) Ragged everything: W not 128-divisible, several blocks, partial tail
    #    (forced tiny blocks).
    k5, k6, k7, k8 = jax.random.split(k4, 4)
    B2, H2, W2 = 3, 11, 20
    p2 = jax.random.normal(k5, (B2, H2, W2), dtype=jnp.float32)
    t2 = jax.random.normal(k6, (B2, H2, W2), dtype=jnp.float32)
    m2 = (jax.random.uniform(k7, (B2, H2, W2)) > 0.5).astype(jnp.float32)

    loss2 = mse_loss_pallas(p2, t2, m2, target_block_elems=160)
    jax.block_until_ready(loss2)
    ref2 = _mse_loss_ref(p2, t2, m2)
    assert jnp.allclose(loss2, ref2, rtol=1e-5, atol=1e-6), (loss2, ref2)

    # 4) Lane-dense multi-block path with the small (8, 128) folded
    #    accumulators and a ragged last block (forced small blocks).
    k9, k10, k11 = jax.random.split(k8, 3)
    B3, H3, W3 = 2, 100, 128
    p3 = jax.random.normal(k9, (B3, H3, W3), dtype=jnp.float32)
    t3 = jax.random.normal(k10, (B3, H3, W3), dtype=jnp.float32)
    m3 = (jax.random.uniform(k11, (B3, H3, W3)) > 0.4).astype(jnp.float32)

    loss3 = mse_loss_pallas(p3, t3, m3, target_block_elems=8192)
    jax.block_until_ready(loss3)
    ref3 = _mse_loss_ref(p3, t3, m3)
    assert jnp.allclose(loss3, ref3, rtol=1e-5, atol=1e-6), (loss3, ref3)

    print("KERNEL_OK")
</pallas_src>

<mosaic_0001>
module attributes {stable_mosaic.version = 11 : i64} {
  func.func @kernel(%arg0: i32, %arg1: i32, %arg2: memref<4x128xf32, #tpu.memory_space<vmem>>, %arg3: memref<4x128xf32, #tpu.memory_space<vmem>>, %arg4: memref<4x128xf32, #tpu.memory_space<vmem>>, %arg5: memref<1x4x128xf32, #tpu.memory_space<vmem>>, %arg6: memref<1x4x128xf32, #tpu.memory_space<vmem>>, %arg7: memref<4x128xf32, #tpu.memory_space<vmem>>, %arg8: memref<4x128xf32, #tpu.memory_space<vmem>>) attributes {dimension_semantics = [#tpu.dimension_semantics<parallel>, #tpu.dimension_semantics<arbitrary>], iteration_bounds = array<i64: 1, 1>, scalar_prefetch = 0 : i64, scratch_operands = 2 : i64, tpu.core_type = #tpu.core_type<tc>, window_params = [{transform_indices = @transform_0, window_bounds = array<i64: 4, 128>}, {transform_indices = @transform_1, window_bounds = array<i64: 4, 128>}, {transform_indices = @transform_2, window_bounds = array<i64: 4, 128>}, {transform_indices = @transform_3, window_bounds = array<i64: 1, 4, 128>}, {transform_indices = @transform_4, window_bounds = array<i64: 1, 4, 128>}]} {
    %c0_i32 = arith.constant 0 : i32
    %0 = arith.cmpi eq, %arg1, %c0_i32 : i32
    %1 = arith.extui %0 : i1 to i32
    %c0_i32_0 = arith.constant 0 : i32
    %2 = arith.cmpi ne, %1, %c0_i32_0 : i32
    scf.if %2 {
      %cst = arith.constant 0.000000e+00 : f32
      %18 = vector.broadcast %cst : f32 to vector<4x128xf32>
      %c0_16 = arith.constant 0 : index
      %c0_17 = arith.constant 0 : index
      %19 = vector.load %arg7[%c0_16, %c0_17] : memref<4x128xf32, #tpu.memory_space<vmem>>, vector<4x128xf32>
      tpu.vector_store %arg7[%c0_16, %c0_17], %18 {strides = array<i32>} : memref<4x128xf32, #tpu.memory_space<vmem>>, vector<4x128xf32>,
      %cst_18 = arith.constant 0.000000e+00 : f32
      %20 = vector.broadcast %cst_18 : f32 to vector<4x128xf32>
      %c0_19 = arith.constant 0 : index
      %c0_20 = arith.constant 0 : index
      %21 = vector.load %arg8[%c0_19, %c0_20] : memref<4x128xf32, #tpu.memory_space<vmem>>, vector<4x128xf32>
      tpu.vector_store %arg8[%c0_19, %c0_20], %20 {strides = array<i32>} : memref<4x128xf32, #tpu.memory_space<vmem>>, vector<4x128xf32>,
    } else {
    }
    %c0 = arith.constant 0 : index
    %c0_1 = arith.constant 0 : index
    %3 = vector.load %arg2[%c0, %c0_1] : memref<4x128xf32, #tpu.memory_space<vmem>>, vector<4x128xf32>
    %c0_2 = arith.constant 0 : index
    %c0_3 = arith.constant 0 : index
    %4 = vector.load %arg3[%c0_2, %c0_3] : memref<4x128xf32, #tpu.memory_space<vmem>>, vector<4x128xf32>
    %c0_4 = arith.constant 0 : index
    %c0_5 = arith.constant 0 : index
    %5 = vector.load %arg4[%c0_4, %c0_5] : memref<4x128xf32, #tpu.memory_space<vmem>>, vector<4x128xf32>
    %6 = arith.subf %3, %4 : vector<4x128xf32>
    %7 = arith.mulf %5, %6 : vector<4x128xf32>
    %8 = arith.mulf %7, %6 : vector<4x128xf32>
    %c0_6 = arith.constant 0 : index
    %c0_7 = arith.constant 0 : index
    %9 = vector.load %arg7[%c0_6, %c0_7] : memref<4x128xf32, #tpu.memory_space<vmem>>, vector<4x128xf32>
    %10 = arith.addf %9, %8 : vector<4x128xf32>
    %c0_8 = arith.constant 0 : index
    %c0_9 = arith.constant 0 : index
    %11 = vector.load %arg7[%c0_8, %c0_9] : memref<4x128xf32, #tpu.memory_space<vmem>>, vector<4x128xf32>
    tpu.vector_store %arg7[%c0_8, %c0_9], %10 {strides = array<i32>} : memref<4x128xf32, #tpu.memory_space<vmem>>, vector<4x128xf32>,
    %c0_10 = arith.constant 0 : index
    %c0_11 = arith.constant 0 : index
    %12 = vector.load %arg8[%c0_10, %c0_11] : memref<4x128xf32, #tpu.memory_space<vmem>>, vector<4x128xf32>
    %13 = arith.addf %12, %5 : vector<4x128xf32>
    %c0_12 = arith.constant 0 : index
    %c0_13 = arith.constant 0 : index
    %14 = vector.load %arg8[%c0_12, %c0_13] : memref<4x128xf32, #tpu.memory_space<vmem>>, vector<4x128xf32>
    tpu.vector_store %arg8[%c0_12, %c0_13], %13 {strides = array<i32>} : memref<4x128xf32, #tpu.memory_space<vmem>>, vector<4x128xf32>,
    %c0_i32_14 = arith.constant 0 : i32
    %15 = arith.cmpi eq, %arg1, %c0_i32_14 : i32
    %16 = arith.extui %15 : i1 to i32
    %c0_i32_15 = arith.constant 0 : i32
    %17 = arith.cmpi ne, %16, %c0_i32_15 : i32
    scf.if %17 {
      %c0_16 = arith.constant 0 : index
      %c0_17 = arith.constant 0 : index
      %18 = vector.load %arg7[%c0_16, %c0_17] : memref<4x128xf32, #tpu.memory_space<vmem>>, vector<4x128xf32>
      %c0_18 = arith.constant 0 : index
      %c0_19 = arith.constant 0 : index
      %c0_20 = arith.constant 0 : index
      %19 = vector.load %arg5[%c0_18, %c0_19, %c0_20] : memref<1x4x128xf32, #tpu.memory_space<vmem>>, vector<1x4x128xf32>
      %20 = vector.shape_cast %19 : vector<1x4x128xf32> to vector<4x128xf32>
      %21 = vector.shape_cast %18 : vector<4x128xf32> to vector<1x4x128xf32>
      tpu.vector_store %arg5[%c0_18, %c0_19, %c0_20], %21 {strides = array<i32>} : memref<1x4x128xf32, #tpu.memory_space<vmem>>, vector<1x4x128xf32>,
      %c0_21 = arith.constant 0 : index
      %c0_22 = arith.constant 0 : index
      %22 = vector.load %arg8[%c0_21, %c0_22] : memref<4x128xf32, #tpu.memory_space<vmem>>, vector<4x128xf32>
      %c0_23 = arith.constant 0 : index
      %c0_24 = arith.constant 0 : index
      %c0_25 = arith.constant 0 : index
      %23 = vector.load %arg6[%c0_23, %c0_24, %c0_25] : memref<1x4x128xf32, #tpu.memory_space<vmem>>, vector<1x4x128xf32>
      %24 = vector.shape_cast %23 : vector<1x4x128xf32> to vector<4x128xf32>
      %25 = vector.shape_cast %22 : vector<4x128xf32> to vector<1x4x128xf32>
      tpu.vector_store %arg6[%c0_23, %c0_24, %c0_25], %25 {strides = array<i32>} : memref<1x4x128xf32, #tpu.memory_space<vmem>>, vector<1x4x128xf32>,
    } else {
    }
    return
  }
  func.func @transform_0(%arg0: i32, %arg1: i32) -> (i32, i32) {
    %c1_i32 = arith.constant 1 : i32
    %0 = arith.muli %arg0, %c1_i32 : i32
    %1 = arith.addi %0, %arg1 : i32
    %c0_i32 = arith.constant 0 : i32
    %c0_i32_0 = arith.constant 0 : i32
    return %1, %c0_i32 : i32, i32
  }
  func.func @transform_1(%arg0: i32, %arg1: i32) -> (i32, i32) {
    %c1_i32 = arith.constant 1 : i32
    %0 = arith.muli %arg0, %c1_i32 : i32
    %1 = arith.addi %0, %arg1 : i32
    %c0_i32 = arith.constant 0 : i32
    %c0_i32_0 = arith.constant 0 : i32
    return %1, %c0_i32 : i32, i32
  }
  func.func @transform_2(%arg0: i32, %arg1: i32) -> (i32, i32) {
    %c1_i32 = arith.constant 1 : i32
    %0 = arith.muli %arg0, %c1_i32 : i32
    %1 = arith.addi %0, %arg1 : i32
    %c0_i32 = arith.constant 0 : i32
    %c0_i32_0 = arith.constant 0 : i32
    return %1, %c0_i32 : i32, i32
  }
  func.func @transform_3(%arg0: i32, %arg1: i32) -> (i32, i32, i32) {
    %c0_i32 = arith.constant 0 : i32
    %c0_i32_0 = arith.constant 0 : i32
    %c0_i32_1 = arith.constant 0 : i32
    return %arg0, %c0_i32, %c0_i32_0 : i32, i32, i32
  }
  func.func @transform_4(%arg0: i32, %arg1: i32) -> (i32, i32, i32) {
    %c0_i32 = arith.constant 0 : i32
    %c0_i32_0 = arith.constant 0 : i32
    %c0_i32_1 = arith.constant 0 : i32
    return %arg0, %c0_i32, %c0_i32_0 : i32, i32, i32
  }
}

</mosaic_0001>

<llo_original>
// kernel: tpu_custom_call.1
$region0: #{tpu_custom_call.1}
  #allocation0 [shape = 'u32[]', space=smem, size = 0x4, offset = 0x4, fixed_abs, tag = 'smem constant byte address 0x4 - core index']
  #allocation1 [shape = 'u32[144,128]{1,0:T(1,128)}', space=vmem, size = 0x12000, scoped, tag = 'internal scratch']
  #allocation2 [shape = 'f32[4,128]{1,0:T(4,128)}', space=vmem, size = 0x800, scoped, tag = 'scratch operand']
  #allocation3 [shape = 'f32[4,128]{1,0:T(4,128)}', space=vmem, size = 0x800, scoped, tag = 'scratch operand']
  %s0 = inlined_call_operand.hbm [shape: f32[4,128], index: 0, kind: input, shape index: {}]
  %s1 = inlined_call_operand.hbm [shape: f32[4,128], index: 1, kind: input, shape index: {}]
  %s2 = inlined_call_operand.vmem [shape: f32[4,128], index: 2, kind: input, shape index: {}]
  %s3 = inlined_call_operand.hbm [shape: f32[1,4,128], index: 3, kind: output, shape index: {0}]
  %s4 = inlined_call_operand.hbm [shape: f32[1,4,128], index: 4, kind: output, shape index: {1}]
  %5 = xla_tuple %s3, %s4
  %s6 = sld [smem:[#allocation0]]
  $region46: #{tpu_custom_call.1} parent=0
    _
  %s8 = ssub.s32 1, %s6
  %s9 = scalar_select 0, %s8, %s6
  $region1: #{tpu_custom_call.1} parent=0
    #allocation4 [shape = 'u8[2048]{0}', space=vmem, size = 0x800, scoped, tag = 'input window, operand 0, single buffered']
    #allocation5 [shape = 's32[1]{0}', space=sflag, size = 0x4, scoped, tag = 'scoped memory for tpu_custom_call.1']
    #allocation6 [shape = 's32[1]{0}', space=sflag, size = 0x4, scoped, tag = 'scoped memory for tpu_custom_call.1']
    #allocation7 [shape = 'u8[2048]{0}', space=vmem, size = 0x800, scoped, tag = 'input window, operand 1, single buffered']
    #allocation8 [shape = 's32[1]{0}', space=sflag, size = 0x4, scoped, tag = 'scoped memory for tpu_custom_call.1']
    #allocation9 [shape = 'u8[2048]{0}', space=vmem, size = 0x800, scoped, tag = 'output window, operand 0, single buffered']
    #allocation10 [shape = 'u8[2048]{0}', space=vmem, size = 0x800, scoped, tag = 'output window, operand 1, single buffered']
    #allocation11 [shape = 's32[1]{0}', space=sflag, size = 0x4, scoped, tag = 'scoped memory for tpu_custom_call.1']
    %10 = vsyncpa [#allocation5], 0
    %11 = vsyncpa [#allocation8], 0
    %12 = vsyncpa [#allocation6], 0
    %13 = vsyncpa [#allocation11], 0
    // Predicated region
    $region2: #{tpu_custom_call.1} parent=1 // pred_check
      _
    $region3: #{tpu_custom_call.1} parent=1 // pred_check_branch
      %15 = sbr.rel (0) target = $region5
    $region4: #{tpu_custom_call.1} parent=1 // pred_region
      %s16 = sadd.s32 0, 0
      %s18 = ssub.s32 64, 64
      %19 = vsyncadd [#allocation5], %s18
      %s20 = smul.addr %s16, 64
      %s21 = scalar_lea.hbm %s0, %s20
      %s23 = sshll.u32 [#allocation4], 4
      %s24 = int_to_ptr.vmem [resolvable:$true] %s23
      %26 = dma.hbm_to_vmem [thread:$0]  %s21, 64, %s24, [#allocation5]
    $region5: #{tpu_custom_call.1} parent=1 // pred_fallthru
      _
    // Predicated region
    $region6: #{tpu_custom_call.1} parent=1 // pred_check
      _
    $region7: #{tpu_custom_call.1} parent=1 // pred_check_branch
      %28 = sbr.rel (0) target = $region9
    $region8: #{tpu_custom_call.1} parent=1 // pred_region
      %s29 = sadd.s32 0, 0
      %s31 = ssub.s32 64, 64
      %32 = vsyncadd [#allocation8], %s31
      %s33 = smul.addr %s29, 64
      %s34 = scalar_lea.hbm %s1, %s33
      %s36 = sshll.u32 [#allocation7], 4
      %s37 = int_to_ptr.vmem [resolvable:$true] %s36
      %39 = dma.hbm_to_vmem [thread:$0]  %s34, 64, %s37, [#allocation8]
    $region9: #{tpu_custom_call.1} parent=1 // pred_fallthru
      _
    // Predicated region
    $region10: #{tpu_custom_call.1} parent=1 // pred_check
      _
    $region11: #{tpu_custom_call.1} parent=1 // pred_check_branch
      %41 = sbr.rel (0) target = $region13
    $region12: #{tpu_custom_call.1} parent=1 // pred_region
      %s42 = sadd.s32 0, 0
      %p43 = scmp.lt.s32.totalorder %s42, 0
      %s44 = scalar_select %p43, %s42, 0
      %s45 = smul.addr %s44, 4
      %s46 = scalar_lea.vmem %s2, %s45
      %s47 = sadd.s32 0, 0
    $region13: #{tpu_custom_call.1} parent=1 // pred_fallthru
      _
    // Predicated region
    $region14: #{tpu_custom_call.1} parent=1 // pred_check
      _
    $region15: #{tpu_custom_call.1} parent=1 // pred_check_branch
      %49 = sbr.rel (0) target = $region17
    $region16: #{tpu_custom_call.1} parent=1 // pred_region
      %50 = dma.done [#allocation5], 64
    $region17: #{tpu_custom_call.1} parent=1 // pred_fallthru
      _
    // Predicated region
    $region18: #{tpu_custom_call.1} parent=1 // pred_check
      _
    $region19: #{tpu_custom_call.1} parent=1 // pred_check_branch
      %52 = sbr.rel (0) target = $region21
    $region20: #{tpu_custom_call.1} parent=1 // pred_region
      %53 = dma.done [#allocation8], 64
    $region21: #{tpu_custom_call.1} parent=1 // pred_fallthru
      _
    %s54 = sadd.s32 0, 0
    %p55 = scmp.lt.s32.totalorder %s54, 0
    %s56 = scalar_select %p55, %s54, 0
    %s57 = smul.addr %s56, 4
    %s58 = scalar_lea.vmem %s2, %s57
    %s59 = sadd.s32 0, 0
    %s60 = sadd.s32 0, 0
    %s61 = sadd.s32 0, 0
    %p62 = scmp.lt.s32.totalorder %s61, 0
    %s63 = scalar_select %p62, %s61, 0
    %s64 = smul.addr %s63, 4
    %s65 = scalar_lea.vmem %s2, %s64
    %s66 = sadd.s32 0, 0
    %p67 = scmp.eq.s32.totalorder 0, 0
    // Predicated region
    $region22: #{tpu_custom_call.1} parent=1 // pred_check
      %p68 = pneg %p67
    $region23: #{tpu_custom_call.1} parent=1 // pred_check_branch
      %70 = sbr.rel (%p68) target = $region25
    $region24: #{tpu_custom_call.1} parent=1 // pred_region
      %71 = vst [vmem:[#allocation2] sm:$0xf] 0.0
      %72 = vst [vmem:[#allocation3] sm:$0xf] 0.0
    $region25: #{tpu_custom_call.1} parent=1 // pred_fallthru
      _
    %v73 = vld [vmem:[#allocation4] sm:$0xf]
    %v74 = vld [vmem:[#allocation7] sm:$0xf]
    %v75 = vld [vmem:[%s65] sm:$0xf]
    %v76 = vsub.f32 %v73, %v74
    %v77 = vmul.f32 %v75, %v76
    %v78 = vmul.f32 %v77, %v76
    %v79 = vld [vmem:[#allocation2] sm:$0xf]
    %v80 = vadd.f32 %v79, %v78
    %81 = vst [vmem:[#allocation2] sm:$0xf] %v80
    %v82 = vld [vmem:[#allocation3] sm:$0xf]
    %v83 = vadd.f32 %v82, %v75
    %84 = vst [vmem:[#allocation3] sm:$0xf] %v83
    // Predicated region
    $region26: #{tpu_custom_call.1} parent=1 // pred_check
      %p85 = pneg %p67
    $region27: #{tpu_custom_call.1} parent=1 // pred_check_branch
      %87 = sbr.rel (%p85) target = $region29
    $region28: #{tpu_custom_call.1} parent=1 // pred_region
      %v88 = vld [vmem:[#allocation2] sm:$0xf]
      %89 = vst [vmem:[#allocation9] sm:$0xf] %v88
      %v90 = vld [vmem:[#allocation3] sm:$0xf]
      %91 = vst [vmem:[#allocation10] sm:$0xf] %v90
    $region29: #{tpu_custom_call.1} parent=1 // pred_fallthru
      _
    // Predicated region
    $region30: #{tpu_custom_call.1} parent=1 // pred_check
      _
    $region31: #{tpu_custom_call.1} parent=1 // pred_check_branch
      %93 = sbr.rel (0) target = $region33
    $region32: #{tpu_custom_call.1} parent=1 // pred_region
      %s95 = ssub.s32 64, 64
      %96 = vsyncadd [#allocation6], %s95
      %s98 = sshll.u32 [#allocation9], 4
      %s99 = int_to_ptr.vmem [resolvable:$true] %s98
      %101 = dma.vmem_to_hbm [thread:$0]  %s99, 64, %s3, [#allocation6]
    $region33: #{tpu_custom_call.1} parent=1 // pred_fallthru
      _
    // Predicated region
    $region34: #{tpu_custom_call.1} parent=1 // pred_check
      _
    $region35: #{tpu_custom_call.1} parent=1 // pred_check_branch
      %103 = sbr.rel (0) target = $region37
    $region36: #{tpu_custom_call.1} parent=1 // pred_region
      %s105 = ssub.s32 64, 64
      %106 = vsyncadd [#allocation11], %s105
      %s108 = sshll.u32 [#allocation10], 4
      %s109 = int_to_ptr.vmem [resolvable:$true] %s108
      %111 = dma.vmem_to_hbm [thread:$0]  %s109, 64, %s4, [#allocation11]
    $region37: #{tpu_custom_call.1} parent=1 // pred_fallthru
      _
    // Predicated region
    $region38: #{tpu_custom_call.1} parent=1 // pred_check
      _
    $region39: #{tpu_custom_call.1} parent=1 // pred_check_branch
      %113 = sbr.rel (0) target = $region41
    $region40: #{tpu_custom_call.1} parent=1 // pred_region
      %114 = dma.done [#allocation6], 64
    $region41: #{tpu_custom_call.1} parent=1 // pred_fallthru
      _
    // Predicated region
    $region42: #{tpu_custom_call.1} parent=1 // pred_check
      _
    $region43: #{tpu_custom_call.1} parent=1 // pred_check_branch
      %116 = sbr.rel (0) target = $region45
    $region44: #{tpu_custom_call.1} parent=1 // pred_region
      %117 = dma.done [#allocation11], 64
    $region45: #{tpu_custom_call.1} parent=1 // pred_fallthru
      _
    %118 = vsyncpa [#allocation5], 1
    %119 = vsyncpa [#allocation8], 1
    %120 = vsyncpa [#allocation6], 1
    %121 = vsyncpa [#allocation11], 1

</llo_original>
